<compile_context>
chip_gen: v5e
topology: v5e:2x2
jax: 0.10.0
libtpu: 0.0.40
codegen_flags: <defaults>
</compile_context>

<pallas_src>
import functools
import math

import jax
import jax.numpy as jnp
from jax.experimental import pallas as pl
from jax.experimental.pallas import tpu as pltpu


def _cdiv(a, b):
    return -(-a // b)


def _round_up(a, b):
    return _cdiv(a, b) * b


def _vmem_capacity_bytes():
    """Per-core VMEM capacity; conservative fallback (v7x: 64 MiB/TC) if query fails."""
    try:
        info = pltpu.get_tpu_info()
        cap = int(getattr(info, "vmem_capacity_bytes", 0) or 0)
        if cap >= (32 << 20):
            return cap
    except Exception:
        pass
    return 64 * 1024 * 1024


def _norm_kernel(x_ref, alpha_ref, bias_ref, o_ref, *, eps, inv_d, inv_dm1):
    # Compute in f32 regardless of input dtype.
    x = x_ref[...].astype(jnp.float32)                     # (tm, D)
    alpha = alpha_ref[...].astype(jnp.float32)             # (1, D), resident across grid
    bias = bias_ref[...].astype(jnp.float32)               # (1, D), resident across grid

    # Mean / unbiased variance via multiply-by-constant (no per-row divides).
    mean = jnp.sum(x, axis=-1, keepdims=True) * jnp.float32(inv_d)          # (tm, 1)
    xc = x - mean
    var = jnp.sum(xc * xc, axis=-1, keepdims=True) * jnp.float32(inv_dm1)   # (tm, 1)

    # torch semantics: eps is added to std (NOT var).  The reciprocal acts on a
    # (tm, 1) column only, so it is off the per-element hot path.
    inv = pl.reciprocal(jnp.sqrt(var) + jnp.float32(eps), approx=False)     # (tm, 1)

    # Fold the per-row inv and the per-column alpha/bias directly into the store;
    # no (tm, D) `scale` temporary is materialized.
    o_ref[...] = ((xc * inv) * alpha + bias).astype(o_ref.dtype)


def _choose_row_tile(rows, d_model, itemsize, sub, vmem_budget):
    # VMEM footprint per row of tile height:
    #   double-buffered input tile  : 2 * d_model * itemsize
    #   double-buffered output tile : 2 * d_model * itemsize
    #   live f32 intermediates (x cast, xc, store operand): ~3 * d_model * 4
    bytes_per_row = 4 * d_model * itemsize + 3 * d_model * 4
    tm = vmem_budget // max(bytes_per_row, 1)
    tm = min(tm, 512)                     # ~85% of HBM roofline already at ~512 rows

    # Keep >= ~8 grid steps (>= 4 per TensorCore on v7x after megacore sharding) so the
    # DMA pipeline stays double-buffered, when the problem is big enough to allow it.
    if rows > 8 * sub:
        tm = min(tm, _round_up(_cdiv(rows, 8), sub))

    if rows <= sub:
        return int(rows)                  # block == full row extent (allowed by Mosaic)
    tm = min(tm, rows)
    tm = max(sub, (tm // sub) * sub)      # sublane-aligned tile height
    return int(tm)


def norm_pallas(x, alpha, bias, eps=1e-6, row_tile=None):
    """LayerNorm-style Norm matching the PyTorch module (unbiased std, eps on std)."""
    orig_shape = x.shape
    d_model = orig_shape[-1]
    rows = int(math.prod(orig_shape[:-1]))
    x2 = x.reshape(rows, d_model)
    alpha2 = alpha.reshape(1, d_model)
    bias2 = bias.reshape(1, d_model)

    itemsize = jnp.dtype(x.dtype).itemsize
    sub = {4: 8, 2: 16, 1: 32}.get(itemsize, 8)   # sublane multiple per dtype

    vmem_cap = _vmem_capacity_bytes()
    vmem_budget = min(vmem_cap // 2, 48 * 1024 * 1024)

    if row_tile is None:
        tm = _choose_row_tile(rows, d_model, itemsize, sub, vmem_budget)
    else:
        tm = int(row_tile)
        if tm < rows:
            tm = max(sub, (tm // sub) * sub)
        tm = min(tm, rows)

    # No padding / slicing: cdiv grid, Pallas masks the partial tail block's writes.
    grid = pl.cdiv(rows, tm)

    # Scoped-VMEM limit sized from the real footprint (I/O double buffers + f32 temps),
    # with headroom, capped safely below physical VMEM (64 MiB v7x, 128 MiB v5e/v6e).
    footprint = tm * (4 * d_model * itemsize + 3 * d_model * 4) + 4 * d_model * (itemsize + 4)
    vmem_limit = int(max(32 * 1024 * 1024,
                         min(footprint + (16 << 20), vmem_cap - (8 << 20))))

    # TODO(synk): when d_model < 128 (lane-sparse), pack 128 // d_model rows per vreg
    # with segmented reductions so output stores are lane-dense (vst instead of vst.msk).

    kernel = functools.partial(
        _norm_kernel,
        eps=float(eps),
        inv_d=float(1.0 / d_model),
        # d_model == 1 guard: torch's unbiased std of one element is NaN; we return bias
        # instead (documented divergence on a degenerate shape).
        inv_dm1=float(1.0 / max(d_model - 1, 1)),
    )

    cost = pl.CostEstimate(
        flops=5 * rows * d_model,
        transcendentals=2 * rows,
        bytes_accessed=2 * rows * d_model * itemsize + 2 * d_model * itemsize,
    )

    out = pl.pallas_call(
        kernel,
        out_shape=jax.ShapeDtypeStruct((rows, d_model), x.dtype),
        grid_spec=pltpu.PrefetchScalarGridSpec(
            num_scalar_prefetch=0,
            grid=(grid,),
            in_specs=[
                pl.BlockSpec((tm, d_model), lambda i: (i, 0)),
                pl.BlockSpec((1, d_model), lambda i: (0, 0)),   # resident across grid
                pl.BlockSpec((1, d_model), lambda i: (0, 0)),   # resident across grid
            ],
            out_specs=pl.BlockSpec((tm, d_model), lambda i: (i, 0)),
        ),
        compiler_params=pltpu.CompilerParams(
            dimension_semantics=("parallel",),
            vmem_limit_bytes=vmem_limit,
        ),
        cost_estimate=cost,
    )(x2, alpha2, bias2)

    return out.reshape(orig_shape)


def norm_reference(x, alpha, bias, eps=1e-6):
    """Plain-JAX reference mirroring the PyTorch forward (unbiased std)."""
    xf = x.astype(jnp.float32)
    mean = jnp.mean(xf, axis=-1, keepdims=True)
    xc = xf - mean
    var = jnp.sum(xc * xc, axis=-1, keepdims=True) / (x.shape[-1] - 1)
    std = jnp.sqrt(var)
    return (alpha * xc / (std + eps) + bias).astype(x.dtype)


if __name__ == "__main__":
    key = jax.random.PRNGKey(0)
    batch, seq, d_model = 2, 8, 32

    x = jax.random.normal(key, (batch, seq, d_model), dtype=jnp.float32)

    # Deterministic parameter init matching the module's __init__:
    # alpha = ones(d_model), bias = zeros(d_model)
    alpha = jnp.ones((d_model,), dtype=jnp.float32)
    bias = jnp.zeros((d_model,), dtype=jnp.float32)

    out = norm_pallas(x, alpha, bias, eps=1e-6)
    out = jax.block_until_ready(out)

    ref = norm_reference(x, alpha, bias, eps=1e-6)
    assert out.shape == x.shape
    assert jnp.allclose(out, ref, atol=1e-5, rtol=1e-5), "mismatch vs reference"

    # Awkward row count (15 rows) exercises the cdiv-grid + masked partial-block path
    # (no padding, no output slicing).
    x_odd = jax.random.normal(jax.random.PRNGKey(0), (3, 5, d_model), dtype=jnp.float32)
    out_odd = jax.block_until_ready(norm_pallas(x_odd, alpha, bias, eps=1e-6))
    ref_odd = norm_reference(x_odd, alpha, bias, eps=1e-6)
    assert out_odd.shape == x_odd.shape
    assert jnp.allclose(out_odd, ref_odd, atol=1e-5, rtol=1e-5), "mismatch (partial block)"

    # Forced-small tile exercises a multi-step grid with a masked tail block.
    out_tiled = jax.block_until_ready(norm_pallas(x_odd, alpha, bias, eps=1e-6, row_tile=8))
    assert jnp.allclose(out_tiled, ref_odd, atol=1e-5, rtol=1e-5), "mismatch (tiled path)"

    print("KERNEL_OK")
</pallas_src>

<mosaic_0001>
module attributes {stable_mosaic.version = 11 : i64} {
  func.func @_norm_kernel(%arg0: i32, %arg1: memref<16x32xf32, #tpu.memory_space<vmem>>, %arg2: memref<1x32xf32, #tpu.memory_space<vmem>>, %arg3: memref<1x32xf32, #tpu.memory_space<vmem>>, %arg4: memref<16x32xf32, #tpu.memory_space<vmem>>) attributes {dimension_semantics = [#tpu.dimension_semantics<parallel>], iteration_bounds = array<i64: 1>, scalar_prefetch = 0 : i64, scratch_operands = 0 : i64, tpu.core_type = #tpu.core_type<tc>, window_params = [{transform_indices = @transform_0, window_bounds = array<i64: 16, 32>}, {pipeline_mode = #tpu.pipeline_mode<synchronous>, transform_indices = @transform_1, window_bounds = array<i64: 1, 32>}, {pipeline_mode = #tpu.pipeline_mode<synchronous>, transform_indices = @transform_2, window_bounds = array<i64: 1, 32>}, {transform_indices = @transform_3, window_bounds = array<i64: 16, 32>}]} {
    %c0 = arith.constant 0 : index
    %c0_0 = arith.constant 0 : index
    %0 = vector.load %arg1[%c0, %c0_0] : memref<16x32xf32, #tpu.memory_space<vmem>>, vector<16x32xf32>
    %c0_1 = arith.constant 0 : index
    %c0_2 = arith.constant 0 : index
    %1 = vector.load %arg2[%c0_1, %c0_2] : memref<1x32xf32, #tpu.memory_space<vmem>>, vector<1x32xf32>
    %c0_3 = arith.constant 0 : index
    %c0_4 = arith.constant 0 : index
    %2 = vector.load %arg3[%c0_3, %c0_4] : memref<1x32xf32, #tpu.memory_space<vmem>>, vector<1x32xf32>
    %cst = arith.constant dense<0.000000e+00> : vector<16xf32>
    %3 = vector.multi_reduction <add>, %0, %cst [1] : vector<16x32xf32> to vector<16xf32>
    %4 = vector.shape_cast %3 : vector<16xf32> to vector<16x1xf32>
    %cst_5 = arith.constant 3.125000e-02 : f32
    %5 = vector.broadcast %cst_5 : f32 to vector<16x1xf32>
    %6 = arith.mulf %4, %5 : vector<16x1xf32>
    %7 = vector.broadcast %6 : vector<16x1xf32> to vector<16x32xf32>
    %8 = arith.subf %0, %7 : vector<16x32xf32>
    %9 = arith.mulf %8, %8 : vector<16x32xf32>
    %cst_6 = arith.constant dense<0.000000e+00> : vector<16xf32>
    %10 = vector.multi_reduction <add>, %9, %cst_6 [1] : vector<16x32xf32> to vector<16xf32>
    %11 = vector.shape_cast %10 : vector<16xf32> to vector<16x1xf32>
    %cst_7 = arith.constant 0.0322580636 : f32
    %12 = vector.broadcast %cst_7 : f32 to vector<16x1xf32>
    %13 = arith.mulf %11, %12 : vector<16x1xf32>
    %14 = math.sqrt %13 : vector<16x1xf32>
    %cst_8 = arith.constant 9.99999997E-7 : f32
    %15 = vector.broadcast %cst_8 : f32 to vector<16x1xf32>
    %16 = arith.addf %14, %15 : vector<16x1xf32>
    %17 = tpu.reciprocal %16 : vector<16x1xf32> -> vector<16x1xf32>
    %18 = vector.broadcast %17 : vector<16x1xf32> to vector<16x32xf32>
    %19 = arith.mulf %8, %18 : vector<16x32xf32>
    %20 = vector.broadcast %1 : vector<1x32xf32> to vector<16x32xf32>
    %21 = arith.mulf %19, %20 : vector<16x32xf32>
    %22 = vector.broadcast %2 : vector<1x32xf32> to vector<16x32xf32>
    %23 = arith.addf %21, %22 : vector<16x32xf32>
    %c0_9 = arith.constant 0 : index
    %c0_10 = arith.constant 0 : index
    %24 = vector.load %arg4[%c0_9, %c0_10] : memref<16x32xf32, #tpu.memory_space<vmem>>, vector<16x32xf32>
    tpu.vector_store %arg4[%c0_9, %c0_10], %23 {strides = array<i32>} : memref<16x32xf32, #tpu.memory_space<vmem>>, vector<16x32xf32>,
    return
  }
  func.func @transform_0(%arg0: i32) -> (i32, i32) {
    %c0_i32 = arith.constant 0 : i32
    %c0_i32_0 = arith.constant 0 : i32
    return %arg0, %c0_i32 : i32, i32
  }
  func.func @transform_1(%arg0: i32) -> (i32, i32) {
    %c0_i32 = arith.constant 0 : i32
    %c0_i32_0 = arith.constant 0 : i32
    %c0_i32_1 = arith.constant 0 : i32
    return %c0_i32, %c0_i32_0 : i32, i32
  }
  func.func @transform_2(%arg0: i32) -> (i32, i32) {
    %c0_i32 = arith.constant 0 : i32
    %c0_i32_0 = arith.constant 0 : i32
    %c0_i32_1 = arith.constant 0 : i32
    return %c0_i32, %c0_i32_0 : i32, i32
  }
  func.func @transform_3(%arg0: i32) -> (i32, i32) {
    %c0_i32 = arith.constant 0 : i32
    %c0_i32_0 = arith.constant 0 : i32
    return %arg0, %c0_i32 : i32, i32
  }
}

</mosaic_0001>

<llo_original>
// kernel: tpu_custom_call.1
$region0: #{tpu_custom_call.1}
  #allocation0 [shape = 'u32[]', space=smem, size = 0x4, offset = 0x4, fixed_abs, tag = 'smem constant byte address 0x4 - core index']
  #allocation1 [shape = 'u32[72,128]{1,0:T(1,128)}', space=vmem, size = 0x9000, scoped, tag = 'internal scratch']
  %s0 = inlined_call_operand.hbm [shape: f32[16,32], index: 0, kind: input, shape index: {}]
  %s1 = inlined_call_operand.hbm [shape: f32[1,32], index: 1, kind: input, shape index: {}]
  %s2 = inlined_call_operand.vmem [shape: f32[1,32], index: 2, kind: input, shape index: {}]
  %s3 = inlined_call_operand.hbm [shape: f32[16,32], index: 3, kind: output, shape index: {}]
  %s4 = sld [smem:[#allocation0]]
  $region30: #{tpu_custom_call.1} parent=0
    _
  %s6 = ssub.s32 1, %s4
  %s7 = scalar_select 0, %s6, %s4
  $region1: #{tpu_custom_call.1} parent=0
    #allocation2 [shape = 'u8[8192]{0}', space=vmem, size = 0x2000, scoped, tag = 'input window, operand 0, single buffered']
    #allocation3 [shape = 's32[1]{0}', space=sflag, size = 0x4, scoped, tag = 'scoped memory for tpu_custom_call.1']
    #allocation4 [shape = 's32[1]{0}', space=sflag, size = 0x4, scoped, tag = 'scoped memory for tpu_custom_call.1']
    #allocation5 [shape = 'u8[512]{0}', space=vmem, size = 0x400, scoped, tag = 'input window, operand 1, single buffered']
    #allocation6 [shape = 's32[1]{0}', space=sflag, size = 0x4, scoped, tag = 'scoped memory for tpu_custom_call.1']
    #allocation7 [shape = 'u8[8192]{0}', space=vmem, size = 0x2000, scoped, tag = 'output window, operand 0, single buffered']
    %8 = vsyncpa [#allocation3], 0
    %9 = vsyncpa [#allocation6], 0
    %10 = vsyncpa [#allocation4], 0
    // Predicated region
    $region2: #{tpu_custom_call.1} parent=1 // pred_check
      _
    $region3: #{tpu_custom_call.1} parent=1 // pred_check_branch
      %12 = sbr.rel (0) target = $region5
    $region4: #{tpu_custom_call.1} parent=1 // pred_region
      %14 = vsyncadd [#allocation3], 0
      %s15 = sshll.u32 %s0, 4
      %s16 = int_to_ptr.hbm [resolvable:$true] %s15
      %s17 = sshll.u32 [#allocation2], 4
      %s18 = int_to_ptr.vmem [resolvable:$true] %s17
      %23 = dma.hbm_to_vmem [thread:$0]  %s16, 256, %s18, [#allocation3], 128, 128, 8
    $region5: #{tpu_custom_call.1} parent=1 // pred_fallthru
      _
    // Predicated region
    $region6: #{tpu_custom_call.1} parent=1 // pred_check
      _
    $region7: #{tpu_custom_call.1} parent=1 // pred_check_branch
      %25 = sbr.rel (0) target = $region9
    $region8: #{tpu_custom_call.1} parent=1 // pred_region
      %27 = vsyncadd [#allocation6], 0
      %s29 = sshll.u32 %s1, 4
      %s30 = int_to_ptr.hbm [resolvable:$true] %s29
      %s31 = sshll.u32 [#allocation5], 4
      %s32 = int_to_ptr.vmem [resolvable:$true] %s31
      %34 = dma.hbm_to_vmem [thread:$0]  %s30, 16, %s32, [#allocation6]
    $region9: #{tpu_custom_call.1} parent=1 // pred_fallthru
      _
    // Predicated region
    $region10: #{tpu_custom_call.1} parent=1 // pred_check
      _
    $region11: #{tpu_custom_call.1} parent=1 // pred_check_branch
      %36 = sbr.rel (0) target = $region13
    $region12: #{tpu_custom_call.1} parent=1 // pred_region
      _
    $region13: #{tpu_custom_call.1} parent=1 // pred_fallthru
      _
    // Predicated region
    $region14: #{tpu_custom_call.1} parent=1 // pred_check
      _
    $region15: #{tpu_custom_call.1} parent=1 // pred_check_branch
      %38 = sbr.rel (0) target = $region17
    $region16: #{tpu_custom_call.1} parent=1 // pred_region
      %40 = dma.done [#allocation3], 256
    $region17: #{tpu_custom_call.1} parent=1 // pred_fallthru
      _
    // Predicated region
    $region18: #{tpu_custom_call.1} parent=1 // pred_check
      _
    $region19: #{tpu_custom_call.1} parent=1 // pred_check_branch
      %42 = sbr.rel (0) target = $region21
    $region20: #{tpu_custom_call.1} parent=1 // pred_region
      %44 = dma.done [#allocation6], 16
    $region21: #{tpu_custom_call.1} parent=1 // pred_fallthru
      _
    %v45 = vld [vmem:[#allocation2] sm:$0xff]
    %v46 = vld [vmem:[#allocation2 + $0x8] sm:$0xff]
    %v47 = vld [vmem:[#allocation5] sm:$0x1]
    %v48 = vld [vmem:[%s2] sm:$0x1]
    %vm49 = vcmask 261120
    %v50 = vsel %vm49, %v45, 0.0
    %51 = vadd.xlane.f32.xlu0 %v50
    %v52 = vpop.xlane.xlu0 %51
    %v53 = vsel %vm49, %v46, 0.0
    %54 = vadd.xlane.f32.xlu0 %v53
    %v55 = vpop.xlane.xlu0 %54
    %v56 = vmul.f32 %v52, 0.03125
    %v57 = vmul.f32 %v55, 0.03125
    %v58 = vsub.f32 %v45, %v56
    %v59 = vsub.f32 %v46, %v57
    %v60 = vmul.f32 %v58, %v58
    %v61 = vmul.f32 %v59, %v59
    %v62 = vsel %vm49, %v60, 0.0
    %63 = vadd.xlane.f32.xlu0 %v62
    %v64 = vpop.xlane.xlu0 %63
    %v65 = vsel %vm49, %v61, 0.0
    %66 = vadd.xlane.f32.xlu0 %v65
    %v67 = vpop.xlane.xlu0 %66
    %v68 = vmul.f32 %v64, 0.032258064
    %v69 = vmul.f32 %v67, 0.032258064
    %v70 = vrsqrt.pop %v68
    %v71 = vmul.f32 %v70, %v68
    %v72 = vmul.f32 %v71, %v70
    %v73 = vmul.f32 0.5, %v72
    %v74 = vsub.f32 1.5, %v73
    %v75 = vmul.f32 %v70, %v74
    %v76 = vmul.f32 %v68, %v75
    %vm77 = vcmp.eq.f32.partialorder %v68, inf
    %v78 = vsel %vm77, %v68, %v76
    %vm79 = vcmp.eq.f32.partialorder %v68, 0.0
    %v80 = vand.u32 %v68, 2147483648
    %v81 = vsel %vm79, %v80, %v78
    %v82 = vrsqrt.pop %v69
    %v83 = vmul.f32 %v82, %v69
    %v84 = vmul.f32 %v83, %v82
    %v85 = vmul.f32 0.5, %v84
    %v86 = vsub.f32 1.5, %v85
    %v87 = vmul.f32 %v82, %v86
    %v88 = vmul.f32 %v69, %v87
    %vm89 = vcmp.eq.f32.partialorder %v69, inf
    %v90 = vsel %vm89, %v69, %v88
    %vm91 = vcmp.eq.f32.partialorder %v69, 0.0
    %v92 = vand.u32 %v69, 2147483648
    %v93 = vsel %vm91, %v92, %v90
    %v94 = vadd.f32 %v81, 1e-06
    %v95 = vadd.f32 %v93, 1e-06
    %v96 = vrcp.pop %v94
    %v97 = vmul.f32 %v94, %v96
    %v98 = vsub.f32 1.0, %v97
    %v99 = vmul.f32 %v96, %v98
    %v100 = vadd.f32 %v96, %v99
    %vm101 = vweird.f32 %v94
    %vm102 = vweird.f32 %v96
    %vm103 = vmor %vm101, %vm102
    %v104 = vsel %vm103, %v96, %v100
    %v105 = vand.u32 2147483647, %v94
    %vm106 = vcmp.eq.f32.partialorder %v105, 8.507059e+37
    %v107 = vand.u32 %v94, 2147483648
    %v108 = vor.u32 1.1754944e-38, %v107
    %v109 = vsel %vm106, %v108, %v104
    %v110 = vrcp.pop %v95
    %v111 = vmul.f32 %v95, %v110
    %v112 = vsub.f32 1.0, %v111
    %v113 = vmul.f32 %v110, %v112
    %v114 = vadd.f32 %v110, %v113
    %vm115 = vweird.f32 %v95
    %vm116 = vweird.f32 %v110
    %vm117 = vmor %vm115, %vm116
    %v118 = vsel %vm117, %v110, %v114
    %v119 = vand.u32 2147483647, %v95
    %vm120 = vcmp.eq.f32.partialorder %v119, 8.507059e+37
    %v121 = vand.u32 %v95, 2147483648
    %v122 = vor.u32 1.1754944e-38, %v121
    %v123 = vsel %vm120, %v122, %v118
    %v124 = vmul.f32 %v58, %v109
    %v125 = vmul.f32 %v59, %v123
    %v127 = vperm.slane %v47, 0
    %v129 = vmul.f32 %v124, %v127
    %v130 = vmul.f32 %v125, %v127
    %v132 = vperm.slane %v48, 0
    %v134 = vadd.f32 %v129, %v132
    %v135 = vadd.f32 %v130, %v132
    %136 = vst.msk [vmem:[#allocation7] sm:$0xff] %vm49, %v134
    %137 = vst.msk [vmem:[#allocation7 + $0x8] sm:$0xff] %vm49, %v135
    // Predicated region
    $region22: #{tpu_custom_call.1} parent=1 // pred_check
      _
    $region23: #{tpu_custom_call.1} parent=1 // pred_check_branch
      %139 = sbr.rel (0) target = $region25
    $region24: #{tpu_custom_call.1} parent=1 // pred_region
      %141 = vsyncadd [#allocation4], 0
      %s142 = sshll.u32 [#allocation7], 4
      %s143 = int_to_ptr.vmem [resolvable:$true] %s142
      %s144 = sshll.u32 %s3, 4
      %s145 = int_to_ptr.hbm [resolvable:$true] %s144
      %150 = dma.vmem_to_hbm [thread:$0]  %s143, 256, %s145, [#allocation4], 128, 128, 8
    $region25: #{tpu_custom_call.1} parent=1 // pred_fallthru
      _
    // Predicated region
    $region26: #{tpu_custom_call.1} parent=1 // pred_check
      _
    $region27: #{tpu_custom_call.1} parent=1 // pred_check_branch
      %152 = sbr.rel (0) target = $region29
    $region28: #{tpu_custom_call.1} parent=1 // pred_region
      %154 = dma.done [#allocation4], 256
    $region29: #{tpu_custom_call.1} parent=1 // pred_fallthru
      _
    %155 = vsyncpa [#allocation3], 1
    %156 = vsyncpa [#allocation6], 1
    %157 = vsyncpa [#allocation4], 1

</llo_original>
